<compile_context>
chip_gen: v7x
topology: tpu7x:2x2x1
jax: 0.10.0
libtpu: 0.0.40
codegen_flags: <defaults>
</compile_context>

<pallas_src>
import functools

import jax
import jax.numpy as jnp
from jax.experimental import pallas as pl
from jax.experimental.pallas import tpu as pltpu


def _stable_softplus(z):
    """softplus(z) = max(z, 0) + log1p(exp(-|z|))  (numerically stable)."""
    return jnp.maximum(z, 0.0) + jnp.log1p(jnp.exp(-jnp.abs(z)))


def _possloss_body(mu, lv_raw, target_ref, maxlv_ref, minlv_ref, out_ref, acc_ref,
                   *, n_total, tn, steps_per_core, exact):
    """Shared math: mu / lv_raw are (TN, D) f32 arrays already loaded."""
    c = pl.program_id(0)
    j = pl.program_id(1)

    tgt = target_ref[...].astype(jnp.float32)          # (TN, D)
    max_lv = maxlv_ref[...].astype(jnp.float32)        # (1, D)
    min_lv = minlv_ref[...].astype(jnp.float32)        # (1, D)

    # log_var bounded from above then below (PETS clamp).
    lv1 = max_lv - _stable_softplus(max_lv - lv_raw)
    lv2 = min_lv + _stable_softplus(lv1 - min_lv)

    inv_var = jnp.exp(-lv2)                             # exact, overflow-safe
    diff = mu - tgt
    contrib = diff * diff * inv_var + lv2               # (TN, D)

    @pl.when(j == 0)
    def _():
        acc_ref[...] = jnp.zeros_like(acc_ref)

    if exact:
        # Grid covers the batch exactly: no masking anywhere.
        acc_ref[...] += jnp.sum(contrib, axis=0, keepdims=True)
    else:
        row0 = (c * steps_per_core + j) * tn
        is_full = row0 + tn <= n_total

        @pl.when(is_full)
        def _():
            acc_ref[...] += jnp.sum(contrib, axis=0, keepdims=True)

        @pl.when(jnp.logical_not(is_full))
        def _():
            rows = jax.lax.broadcasted_iota(jnp.int32, contrib.shape, 0) + row0
            masked = jnp.where(rows < n_total, contrib, 0.0)
            acc_ref[...] += jnp.sum(masked, axis=0, keepdims=True)

    @pl.when(j == pl.num_programs(1) - 1)
    def _():
        total = jnp.sum(acc_ref[...], keepdims=True)                 # (1, 1)
        out_ref[...] = jnp.broadcast_to(total, out_ref.shape).astype(out_ref.dtype)


def _possloss_kernel_packed(pred_ref, target_ref, maxlv_ref, minlv_ref,
                            out_ref, acc_ref, *, d, **kw):
    """pred arrives unsplit as a (TN, 2D) tile; static column slices."""
    mu = pred_ref[:, :d].astype(jnp.float32)
    lv_raw = pred_ref[:, d:].astype(jnp.float32)
    _possloss_body(mu, lv_raw, target_ref, maxlv_ref, minlv_ref, out_ref, acc_ref, **kw)


def _possloss_kernel_split(mean_ref, lv_ref, target_ref, maxlv_ref, minlv_ref,
                           out_ref, acc_ref, **kw):
    """mean / raw-log_var arrive as separate lane-aligned (TN, D) tiles."""
    _possloss_body(mean_ref[...].astype(jnp.float32), lv_ref[...].astype(jnp.float32),
                   target_ref, maxlv_ref, minlv_ref, out_ref, acc_ref, **kw)


def _vmem_budget():
    """Per-generation streamed-tile budget + vmem limit."""
    try:
        cap = int(pltpu.get_tpu_info().vmem_capacity_bytes)
    except Exception:
        cap = 64 * 1024 * 1024                       # conservative fallback
    budget = max(8 << 20, min(32 << 20, cap // 4))   # v6e/v5e: 32 MiB, v7x: 16 MiB
    limit = min(cap, budget + (16 << 20))
    return budget, limit


def _choose_row_tile(n, per_row_bytes, budget_bytes, sublane):
    """Row-tile: largest tile whose double-buffered stream fits the budget."""
    if n <= sublane:
        return n
    tn = budget_bytes // (2 * per_row_bytes)         # x2: double buffering
    tn = max(sublane, min(tn, n))
    if tn >= n:
        return n
    return max(sublane, (tn // sublane) * sublane)


def possloss(pred, target, max_logvar, min_logvar, weight=1.0, row_tile=None):
    """Forward pass of Possloss. Returns a scalar float32 loss."""
    n, two_d = pred.shape
    d = target.shape[1]
    assert two_d == 2 * d

    max_lv = max_logvar[:, :d].astype(jnp.float32)   # glue: slice [:, :length]
    min_lv = min_logvar[:, :d].astype(jnp.float32)

    budget_bytes, vmem_limit = _vmem_budget()
    pred_isz = pred.dtype.itemsize
    tgt_isz = target.dtype.itemsize
    sublane = max(8, 32 // pred_isz, 32 // tgt_isz)
    per_row_bytes = 2 * d * pred_isz + d * tgt_isz

    if row_tile is None:
        tn = _choose_row_tile(n, per_row_bytes, budget_bytes, sublane)
    else:
        tn = min(int(row_tile), n)
        if tn < n:
            tn = max(sublane, (tn // sublane) * sublane)

    num_row_blocks = pl.cdiv(n, tn)
    num_cores = 2 if num_row_blocks >= 2 else 1      # 2 TCs on v7x, harmless elsewhere
    steps_per_core = pl.cdiv(num_row_blocks, num_cores)
    exact = (num_cores * steps_per_core * tn == n)
    last_block = num_row_blocks - 1

    def row_block(c, j):
        # Clamp so over-allocated grid points re-read a valid block (masked to 0).
        return jnp.minimum(c * steps_per_core + j, last_block)

    common = dict(n_total=n, tn=tn, steps_per_core=steps_per_core, exact=exact)

    if d % 128 == 0:
        # Lane-aligned split of pred via two BlockSpecs (column blocks 0 and 1).
        kernel = functools.partial(_possloss_kernel_split, **common)
        pred_specs = [
            pl.BlockSpec((tn, d), lambda c, j: (row_block(c, j), 0)),
            pl.BlockSpec((tn, d), lambda c, j: (row_block(c, j), 1)),
        ]
        pred_args = (pred, pred)
    else:
        # TODO(synk): lane-fold rows when D < 128 so mean/log_var land lane-dense.
        kernel = functools.partial(_possloss_kernel_packed, d=d, **common)
        pred_specs = [pl.BlockSpec((tn, 2 * d), lambda c, j: (row_block(c, j), 0))]
        pred_args = (pred,)

    in_specs = pred_specs + [
        pl.BlockSpec((tn, d), lambda c, j: (row_block(c, j), 0)),   # target
        pl.BlockSpec((1, d), lambda c, j: (0, 0)),                   # max_logvar[:, :D]
        pl.BlockSpec((1, d), lambda c, j: (0, 0)),                   # min_logvar[:, :D]
    ]

    cost = pl.CostEstimate(
        flops=int(20 * n * d),
        transcendentals=int(5 * n * d),
        bytes_accessed=int(pred.nbytes + target.nbytes + max_lv.nbytes
                           + min_lv.nbytes + num_cores * 128 * 4),
    )

    partials = pl.pallas_call(
        kernel,
        out_shape=jax.ShapeDtypeStruct((num_cores, 1, 128), jnp.float32),
        grid=(num_cores, steps_per_core),
        in_specs=in_specs,
        out_specs=pl.BlockSpec((None, 1, 128), lambda c, j: (c, 0, 0)),
        scratch_shapes=[pltpu.VMEM((1, d), jnp.float32)],   # per-core lane accumulator
        compiler_params=pltpu.CompilerParams(
            dimension_semantics=("parallel", "arbitrary"),
            vmem_limit_bytes=vmem_limit,
        ),
        cost_estimate=cost,
    )(*pred_args, target, max_lv, min_lv)

    total_sum = jnp.sum(partials[:, 0, 0])
    loss = total_sum * (float(weight) / float(n * d))
    loss = loss + 0.01 * (jnp.mean(max_lv) - jnp.mean(min_lv))
    return loss


def possloss_ref(pred, target, max_logvar, min_logvar, weight=1.0):
    """Pure-JAX reference mirroring the PyTorch forward exactly."""
    n = pred.shape[0]
    d = target.shape[1]
    mean, log_var = jnp.split(pred, 2, axis=1)
    mean = mean.astype(jnp.float32)
    log_var = log_var.astype(jnp.float32).reshape(n, -1)
    max_lv = max_logvar[:, :d].astype(jnp.float32)
    min_lv = min_logvar[:, :d].astype(jnp.float32)
    log_var = max_lv - jax.nn.softplus(max_lv - log_var)
    log_var = min_lv + jax.nn.softplus(log_var - min_lv)
    log_var = log_var.reshape(target.shape)
    inv_var = jnp.exp(-log_var)
    mse_loss = jnp.mean((mean - target.astype(jnp.float32)) ** 2 * inv_var * weight)
    var_loss = jnp.mean(log_var * weight)
    total = mse_loss + var_loss
    total += 0.01 * jnp.mean(max_lv) - 0.01 * jnp.mean(min_lv)
    return total


if __name__ == "__main__":
    # Small base shapes: batch N=2, feature dim D=32, param shape (1, 48) (>= D).
    N, D, D_MAX = 2, 32, 48

    key = jax.random.PRNGKey(0)
    k1, k2, k3, k4, k5, k6, k7, k8 = jax.random.split(key, 8)

    max_logvar = jax.random.normal(k1, (1, D_MAX), dtype=jnp.float32)
    min_logvar = 0.1 * jax.random.normal(k2, (1, D_MAX), dtype=jnp.float32)

    pred = jax.random.normal(k3, (N, 2 * D), dtype=jnp.float32)
    target = jax.random.normal(k4, (N, D), dtype=jnp.float32)

    loss = jax.block_until_ready(possloss(pred, target, max_logvar, min_logvar, weight=1.0))
    ref = possloss_ref(pred, target, max_logvar, min_logvar, weight=1.0)
    assert jnp.allclose(loss, ref, rtol=1e-4, atol=1e-6), (loss, ref)

    # Multi-tile path: 2-core split, sequential accumulation, gated tail masking.
    N2 = 300
    pred2 = jax.random.normal(k5, (N2, 2 * D), dtype=jnp.float32)
    target2 = jax.random.normal(k6, (N2, D), dtype=jnp.float32)
    loss2 = jax.block_until_ready(
        possloss(pred2, target2, max_logvar, min_logvar, weight=1.0, row_tile=128))
    ref2 = possloss_ref(pred2, target2, max_logvar, min_logvar, weight=1.0)
    assert jnp.allclose(loss2, ref2, rtol=1e-4, atol=1e-6), (loss2, ref2)

    # bf16 inputs (kernel upcasts to f32 internally; halves HBM traffic).
    pred2_bf = pred2.astype(jnp.bfloat16)
    target2_bf = target2.astype(jnp.bfloat16)
    loss2_bf = jax.block_until_ready(
        possloss(pred2_bf, target2_bf, max_logvar, min_logvar, weight=1.0, row_tile=128))
    ref2_bf = possloss_ref(pred2_bf.astype(jnp.float32), target2_bf.astype(jnp.float32),
                           max_logvar, min_logvar, weight=1.0)
    assert jnp.allclose(loss2_bf, ref2_bf, rtol=1e-4, atol=1e-6), (loss2_bf, ref2_bf)

    # D multiple of 128 -> lane-aligned two-BlockSpec split of pred (+ masking).
    N3, D3, D3_MAX = 272, 128, 192
    max_logvar3 = jax.random.normal(k7, (1, D3_MAX), dtype=jnp.float32)
    min_logvar3 = 0.1 * jax.random.normal(k8, (1, D3_MAX), dtype=jnp.float32)
    k9, k10 = jax.random.split(k8)
    pred3 = jax.random.normal(k9, (N3, 2 * D3), dtype=jnp.float32)
    target3 = jax.random.normal(k10, (N3, D3), dtype=jnp.float32)
    loss3 = jax.block_until_ready(
        possloss(pred3, target3, max_logvar3, min_logvar3, weight=0.5, row_tile=128))
    ref3 = possloss_ref(pred3, target3, max_logvar3, min_logvar3, weight=0.5)
    assert jnp.allclose(loss3, ref3, rtol=1e-4, atol=1e-6), (loss3, ref3)

    print("KERNEL_OK")
</pallas_src>

<mosaic_0001>
module attributes {stable_mosaic.version = 11 : i64} {
  func.func @_possloss_kernel_packed(%arg0: i32, %arg1: i32, %arg2: memref<2x64xf32, #tpu.memory_space<vmem>>, %arg3: memref<2x32xf32, #tpu.memory_space<vmem>>, %arg4: memref<1x32xf32, #tpu.memory_space<vmem>>, %arg5: memref<1x32xf32, #tpu.memory_space<vmem>>, %arg6: memref<1x1x128xf32, #tpu.memory_space<vmem>>, %arg7: memref<1x32xf32, #tpu.memory_space<vmem>>) attributes {dimension_semantics = [#tpu.dimension_semantics<parallel>, #tpu.dimension_semantics<arbitrary>], iteration_bounds = array<i64: 1, 1>, scalar_prefetch = 0 : i64, scratch_operands = 1 : i64, tpu.core_type = #tpu.core_type<tc>, window_params = [{transform_indices = @transform_0, window_bounds = array<i64: 2, 64>}, {transform_indices = @transform_1, window_bounds = array<i64: 2, 32>}, {pipeline_mode = #tpu.pipeline_mode<synchronous>, transform_indices = @transform_2, window_bounds = array<i64: 1, 32>}, {pipeline_mode = #tpu.pipeline_mode<synchronous>, transform_indices = @transform_3, window_bounds = array<i64: 1, 32>}, {transform_indices = @transform_4, window_bounds = array<i64: 1, 1, 128>}]} {
    %c0 = arith.constant 0 : index
    %c0_0 = arith.constant 0 : index
    %0 = vector.load %arg2[%c0, %c0_0] : memref<2x64xf32, #tpu.memory_space<vmem>>, vector<2x32xf32>
    %c0_1 = arith.constant 0 : index
    %c32 = arith.constant 32 : index
    %1 = vector.load %arg2[%c0_1, %c32] : memref<2x64xf32, #tpu.memory_space<vmem>>, vector<2x32xf32>
    %c0_2 = arith.constant 0 : index
    %c0_3 = arith.constant 0 : index
    %2 = vector.load %arg3[%c0_2, %c0_3] : memref<2x32xf32, #tpu.memory_space<vmem>>, vector<2x32xf32>
    %c0_4 = arith.constant 0 : index
    %c0_5 = arith.constant 0 : index
    %3 = vector.load %arg4[%c0_4, %c0_5] : memref<1x32xf32, #tpu.memory_space<vmem>>, vector<1x32xf32>
    %c0_6 = arith.constant 0 : index
    %c0_7 = arith.constant 0 : index
    %4 = vector.load %arg5[%c0_6, %c0_7] : memref<1x32xf32, #tpu.memory_space<vmem>>, vector<1x32xf32>
    %5 = vector.broadcast %3 : vector<1x32xf32> to vector<2x32xf32>
    %6 = arith.subf %5, %1 : vector<2x32xf32>
    %cst = arith.constant 0.000000e+00 : f32
    %7 = vector.broadcast %cst : f32 to vector<2x32xf32>
    %8 = arith.maximumf %6, %7 : vector<2x32xf32>
    %9 = math.absf %6 : vector<2x32xf32>
    %cst_8 = arith.constant 0.000000e+00 : f32
    %10 = vector.broadcast %cst_8 : f32 to vector<2x32xf32>
    %11 = arith.subf %10, %9 : vector<2x32xf32>
    %12 = math.exp %11 : vector<2x32xf32>
    %13 = math.log1p %12 : vector<2x32xf32>
    %14 = arith.addf %8, %13 : vector<2x32xf32>
    %15 = vector.broadcast %3 : vector<1x32xf32> to vector<2x32xf32>
    %16 = arith.subf %15, %14 : vector<2x32xf32>
    %17 = vector.broadcast %4 : vector<1x32xf32> to vector<2x32xf32>
    %18 = arith.subf %16, %17 : vector<2x32xf32>
    %cst_9 = arith.constant 0.000000e+00 : f32
    %19 = vector.broadcast %cst_9 : f32 to vector<2x32xf32>
    %20 = arith.maximumf %18, %19 : vector<2x32xf32>
    %21 = math.absf %18 : vector<2x32xf32>
    %cst_10 = arith.constant 0.000000e+00 : f32
    %22 = vector.broadcast %cst_10 : f32 to vector<2x32xf32>
    %23 = arith.subf %22, %21 : vector<2x32xf32>
    %24 = math.exp %23 : vector<2x32xf32>
    %25 = math.log1p %24 : vector<2x32xf32>
    %26 = arith.addf %20, %25 : vector<2x32xf32>
    %27 = vector.broadcast %4 : vector<1x32xf32> to vector<2x32xf32>
    %28 = arith.addf %27, %26 : vector<2x32xf32>
    %cst_11 = arith.constant 0.000000e+00 : f32
    %29 = vector.broadcast %cst_11 : f32 to vector<2x32xf32>
    %30 = arith.subf %29, %28 : vector<2x32xf32>
    %31 = math.exp %30 : vector<2x32xf32>
    %32 = arith.subf %0, %2 : vector<2x32xf32>
    %33 = arith.mulf %32, %32 : vector<2x32xf32>
    %34 = arith.mulf %33, %31 : vector<2x32xf32>
    %35 = arith.addf %34, %28 : vector<2x32xf32>
    %c0_i32 = arith.constant 0 : i32
    %36 = arith.cmpi eq, %arg1, %c0_i32 : i32
    %37 = arith.extui %36 : i1 to i32
    %c0_i32_12 = arith.constant 0 : i32
    %38 = arith.cmpi ne, %37, %c0_i32_12 : i32
    scf.if %38 {
      %cst_20 = arith.constant 0.000000e+00 : f32
      %47 = vector.broadcast %cst_20 : f32 to vector<1x32xf32>
      %c0_21 = arith.constant 0 : index
      %c0_22 = arith.constant 0 : index
      %48 = vector.load %arg7[%c0_21, %c0_22] : memref<1x32xf32, #tpu.memory_space<vmem>>, vector<1x32xf32>
      tpu.vector_store %arg7[%c0_21, %c0_22], %47 {strides = array<i32>} : memref<1x32xf32, #tpu.memory_space<vmem>>, vector<1x32xf32>,
    } else {
    }
    %c0_13 = arith.constant 0 : index
    %c0_14 = arith.constant 0 : index
    %39 = vector.load %arg7[%c0_13, %c0_14] : memref<1x32xf32, #tpu.memory_space<vmem>>, vector<1x32xf32>
    %cst_15 = arith.constant dense<0.000000e+00> : vector<32xf32>
    %40 = vector.multi_reduction <add>, %35, %cst_15 [0] : vector<2x32xf32> to vector<32xf32>
    %41 = vector.shape_cast %40 : vector<32xf32> to vector<1x32xf32>
    %42 = arith.addf %39, %41 : vector<1x32xf32>
    %c0_16 = arith.constant 0 : index
    %c0_17 = arith.constant 0 : index
    %43 = vector.load %arg7[%c0_16, %c0_17] : memref<1x32xf32, #tpu.memory_space<vmem>>, vector<1x32xf32>
    tpu.vector_store %arg7[%c0_16, %c0_17], %42 {strides = array<i32>} : memref<1x32xf32, #tpu.memory_space<vmem>>, vector<1x32xf32>,
    %c0_i32_18 = arith.constant 0 : i32
    %44 = arith.cmpi eq, %arg1, %c0_i32_18 : i32
    %45 = arith.extui %44 : i1 to i32
    %c0_i32_19 = arith.constant 0 : i32
    %46 = arith.cmpi ne, %45, %c0_i32_19 : i32
    scf.if %46 {
      %c0_20 = arith.constant 0 : index
      %c0_21 = arith.constant 0 : index
      %47 = vector.load %arg7[%c0_20, %c0_21] : memref<1x32xf32, #tpu.memory_space<vmem>>, vector<1x32xf32>
      %48 = vector.shape_cast %47 : vector<1x32xf32> to vector<1x1x32xf32>
      %cst_22 = arith.constant dense<0.000000e+00> : vector<1xf32>
      %49 = vector.multi_reduction <add>, %48, %cst_22 [1, 2] : vector<1x1x32xf32> to vector<1xf32>
      %50 = vector.shape_cast %49 : vector<1xf32> to vector<1x1x1xf32>
      %51 = vector.extract %50[0, 0, 0] : f32 from vector<1x1x1xf32>
      %52 = vector.broadcast %51 : f32 to vector<1x1xf32>
      %53 = vector.shape_cast %52 : vector<1x1xf32> to vector<1x1xf32>
      %54 = vector.broadcast %53 : vector<1x1xf32> to vector<1x128xf32>
      %c0_23 = arith.constant 0 : index
      %c0_24 = arith.constant 0 : index
      %c0_25 = arith.constant 0 : index
      %55 = vector.load %arg6[%c0_23, %c0_24, %c0_25] : memref<1x1x128xf32, #tpu.memory_space<vmem>>, vector<1x1x128xf32>
      %56 = vector.shape_cast %55 : vector<1x1x128xf32> to vector<1x128xf32>
      %57 = vector.shape_cast %54 : vector<1x128xf32> to vector<1x1x128xf32>
      tpu.vector_store %arg6[%c0_23, %c0_24, %c0_25], %57 {strides = array<i32>} : memref<1x1x128xf32, #tpu.memory_space<vmem>>, vector<1x1x128xf32>,
    } else {
    }
    return
  }
  func.func @transform_0(%arg0: i32, %arg1: i32) -> (i32, i32) {
    %c1_i32 = arith.constant 1 : i32
    %0 = arith.muli %arg0, %c1_i32 : i32
    %1 = arith.addi %0, %arg1 : i32
    %c0_i32 = arith.constant 0 : i32
    %2 = arith.minsi %1, %c0_i32 : i32
    %c0_i32_0 = arith.constant 0 : i32
    %c0_i32_1 = arith.constant 0 : i32
    return %2, %c0_i32_0 : i32, i32
  }
  func.func @transform_1(%arg0: i32, %arg1: i32) -> (i32, i32) {
    %c1_i32 = arith.constant 1 : i32
    %0 = arith.muli %arg0, %c1_i32 : i32
    %1 = arith.addi %0, %arg1 : i32
    %c0_i32 = arith.constant 0 : i32
    %2 = arith.minsi %1, %c0_i32 : i32
    %c0_i32_0 = arith.constant 0 : i32
    %c0_i32_1 = arith.constant 0 : i32
    return %2, %c0_i32_0 : i32, i32
  }
  func.func @transform_2(%arg0: i32, %arg1: i32) -> (i32, i32) {
    %c0_i32 = arith.constant 0 : i32
    %c0_i32_0 = arith.constant 0 : i32
    %c0_i32_1 = arith.constant 0 : i32
    return %c0_i32, %c0_i32_0 : i32, i32
  }
  func.func @transform_3(%arg0: i32, %arg1: i32) -> (i32, i32) {
    %c0_i32 = arith.constant 0 : i32
    %c0_i32_0 = arith.constant 0 : i32
    %c0_i32_1 = arith.constant 0 : i32
    return %c0_i32, %c0_i32_0 : i32, i32
  }
  func.func @transform_4(%arg0: i32, %arg1: i32) -> (i32, i32, i32) {
    %c0_i32 = arith.constant 0 : i32
    %c0_i32_0 = arith.constant 0 : i32
    %c0_i32_1 = arith.constant 0 : i32
    return %arg0, %c0_i32, %c0_i32_0 : i32, i32, i32
  }
}

</mosaic_0001>

<llo_original>
// kernel: tpu_custom_call.1
$region0: #{tpu_custom_call.1}
  #allocation0 [shape = 'u32[]', space=smem, size = 0x4, offset = 0x4, fixed_abs, tag = 'smem constant byte address 0x4 - core index']
  #allocation1 [shape = 'u32[144,128]{1,0:T(1,128)}', space=vmem, size = 0x12000, scoped, tag = 'internal scratch']
  #allocation2 [shape = 'f32[1,32]{1,0:T(1,128)}', space=vmem, size = 0x200, scoped, tag = 'scratch operand']
  %s0 = inlined_call_operand.hbm [shape: f32[2,64], index: 0, kind: input, shape index: {}]
  %s1 = inlined_call_operand.vmem [shape: f32[2,32], index: 1, kind: input, shape index: {}]
  %s2 = inlined_call_operand.vmem [shape: f32[1,32], index: 2, kind: input, shape index: {}]
  %s3 = inlined_call_operand.vmem [shape: f32[1,32], index: 3, kind: input, shape index: {}]
  %s4 = inlined_call_operand.hbm [shape: f32[1,1,128], index: 4, kind: output, shape index: {}]
  %s5 = sld [smem:[#allocation0]]
  $region38: #{tpu_custom_call.1} parent=0
    _
  %s7 = ssub.s32 1, %s5
  %s8 = scalar_select 0, %s7, %s5
  $region1: #{tpu_custom_call.1} parent=0
    #allocation3 [shape = 'u8[1024]{0}', space=vmem, size = 0x400, scoped, tag = 'input window, operand 0, single buffered']
    #allocation4 [shape = 's32[1]{0}', space=sflag, size = 0x4, scoped, tag = 'scoped memory for tpu_custom_call.1']
    #allocation5 [shape = 's32[1]{0}', space=sflag, size = 0x4, scoped, tag = 'scoped memory for tpu_custom_call.1']
    #allocation6 [shape = 'u8[512]{0}', space=vmem, size = 0x400, scoped, tag = 'output window, operand 0, single buffered']
    %9 = vsyncpa [#allocation4], 0
    %10 = vsyncpa [#allocation5], 0
    // Predicated region
    $region2: #{tpu_custom_call.1} parent=1 // pred_check
      _
    $region3: #{tpu_custom_call.1} parent=1 // pred_check_branch
      %12 = sbr.rel (0) target = $region5
    $region4: #{tpu_custom_call.1} parent=1 // pred_region
      %s13 = sadd.s32 0, 0
      %p14 = scmp.lt.s32.totalorder %s13, 0
      %s15 = scalar_select %p14, %s13, 0
      %s17 = ssub.s32 32, 32
      %18 = vsyncadd [#allocation4], %s17
      %s19 = smul.addr %s15, 32
      %s20 = scalar_lea.hbm %s0, %s19
      %s22 = sshll.u32 [#allocation3], 4
      %s23 = int_to_ptr.vmem [resolvable:$true] %s22
      %25 = dma.hbm_to_vmem [thread:$0]  %s20, 32, %s23, [#allocation4]
    $region5: #{tpu_custom_call.1} parent=1 // pred_fallthru
      _
    // Predicated region
    $region6: #{tpu_custom_call.1} parent=1 // pred_check
      _
    $region7: #{tpu_custom_call.1} parent=1 // pred_check_branch
      %27 = sbr.rel (0) target = $region9
    $region8: #{tpu_custom_call.1} parent=1 // pred_region
      %s28 = sadd.s32 0, 0
      %p29 = scmp.lt.s32.totalorder %s28, 0
      %s30 = scalar_select %p29, %s28, 0
      %p31 = scmp.lt.s32.totalorder %s30, 0
      %s32 = scalar_select %p31, %s30, 0
      %s33 = smul.addr %s32, 2
      %s34 = scalar_lea.vmem %s1, %s33
      %s35 = sadd.s32 0, 0
      %p36 = scmp.lt.s32.totalorder %s35, 0
      %s37 = scalar_select %p36, %s35, 0
    $region9: #{tpu_custom_call.1} parent=1 // pred_fallthru
      _
    // Predicated region
    $region10: #{tpu_custom_call.1} parent=1 // pred_check
      _
    $region11: #{tpu_custom_call.1} parent=1 // pred_check_branch
      %39 = sbr.rel (0) target = $region13
    $region12: #{tpu_custom_call.1} parent=1 // pred_region
      _
    $region13: #{tpu_custom_call.1} parent=1 // pred_fallthru
      _
    // Predicated region
    $region14: #{tpu_custom_call.1} parent=1 // pred_check
      _
    $region15: #{tpu_custom_call.1} parent=1 // pred_check_branch
      %41 = sbr.rel (0) target = $region17
    $region16: #{tpu_custom_call.1} parent=1 // pred_region
      _
    $region17: #{tpu_custom_call.1} parent=1 // pred_fallthru
      _
    // Predicated region
    $region18: #{tpu_custom_call.1} parent=1 // pred_check
      _
    $region19: #{tpu_custom_call.1} parent=1 // pred_check_branch
      %43 = sbr.rel (0) target = $region21
    $region20: #{tpu_custom_call.1} parent=1 // pred_region
      %44 = dma.done [#allocation4], 32
    $region21: #{tpu_custom_call.1} parent=1 // pred_fallthru
      _
    %s45 = sadd.s32 0, 0
    %p46 = scmp.lt.s32.totalorder %s45, 0
    %s47 = scalar_select %p46, %s45, 0
    %p48 = scmp.lt.s32.totalorder %s47, 0
    %s49 = scalar_select %p48, %s47, 0
    %s50 = smul.addr %s49, 2
    %s51 = scalar_lea.vmem %s1, %s50
    %s52 = sadd.s32 0, 0
    %p53 = scmp.lt.s32.totalorder %s52, 0
    %s54 = scalar_select %p53, %s52, 0
    %s55 = sadd.s32 0, 0
    %p56 = scmp.lt.s32.totalorder %s55, 0
    %s57 = scalar_select %p56, %s55, 0
    %p58 = scmp.lt.s32.totalorder %s57, 0
    %s59 = scalar_select %p58, %s57, 0
    %s60 = smul.addr %s59, 2
    %s61 = scalar_lea.vmem %s1, %s60
    %s62 = sadd.s32 0, 0
    %p63 = scmp.lt.s32.totalorder %s62, 0
    %s64 = scalar_select %p63, %s62, 0
    %v65 = vld [vmem:[#allocation3] sm:$0x3]
    %v66 = vld [vmem:[%s61] sm:$0x3]
    %v67 = vld [vmem:[%s2] sm:$0x1]
    %v68 = vld [vmem:[%s3] sm:$0x1]
    %v70 = vlaneseq
    %v71 = vshrl.u32 %v70, 7
    %v72 = vsub.s32 0, %v71
    %v73 = vrot.slane %v67, %v72
    %76 = vrot.lane.b32.xlu0 %v65, 96
    %v77 = vpop.permute.xlu0 %76
    %v79 = vsub.f32 %v73, %v77
    %v80 = vmax.f32 %v79, 0.0
    %v81 = vand.u32 2147483647, %v79
    %v82 = vsub.f32 0.0, %v81
    %v83 = vmul.f32 %v82, 1.442695
    %v84 = vpow.pop %v83
    %v85 = vadd.f32 %v84, 1.0
    %v86 = vlog2.pop %v85
    %v87 = vmul.f32 %v86, 0.6931472
    %v88 = vmul.f32 -0.5, %v84
    %v89 = vadd.f32 %v88, 1.0
    %v90 = vmul.f32 %v89, %v84
    %v91 = vand.u32 2147483647, %v84
    %vm92 = vcmp.lt.f32.partialorder %v91, 0.0004427343
    %v93 = vsel %vm92, %v90, %v87
    %v94 = vadd.f32 %v80, %v93
    %v95 = vsub.f32 %v73, %v94
    %v97 = vlaneseq
    %v98 = vshrl.u32 %v97, 7
    %v99 = vsub.s32 0, %v98
    %v100 = vrot.slane %v68, %v99
    %v102 = vsub.f32 %v95, %v100
    %v103 = vmax.f32 %v102, 0.0
    %v104 = vand.u32 2147483647, %v102
    %v105 = vsub.f32 0.0, %v104
    %v106 = vmul.f32 %v105, 1.442695
    %v107 = vpow.pop %v106
    %v108 = vadd.f32 %v107, 1.0
    %v109 = vlog2.pop %v108
    %v110 = vmul.f32 %v109, 0.6931472
    %v111 = vmul.f32 -0.5, %v107
    %v112 = vadd.f32 %v111, 1.0
    %v113 = vmul.f32 %v112, %v107
    %v114 = vand.u32 2147483647, %v107
    %vm115 = vcmp.lt.f32.partialorder %v114, 0.0004427343
    %v116 = vsel %vm115, %v113, %v110
    %v117 = vadd.f32 %v103, %v116
    %v118 = vadd.f32 %v100, %v117
    %v119 = vsub.f32 0.0, %v118
    %v120 = vmul.f32 %v119, 1.442695
    %v121 = vpow.pop %v120
    %v122 = vsub.f32 %v65, %v66
    %v123 = vmul.f32 %v122, %v122
    %v124 = vmul.f32 %v123, %v121
    %v125 = vadd.f32 %v124, %v118
    %p126 = scmp.eq.s32.totalorder 0, 0
    // Predicated region
    $region22: #{tpu_custom_call.1} parent=1 // pred_check
      %p127 = pneg %p126
    $region23: #{tpu_custom_call.1} parent=1 // pred_check_branch
      %129 = sbr.rel (%p127) target = $region25
    $region24: #{tpu_custom_call.1} parent=1 // pred_region
      %vm130 = vcmask 253952
      %131 = vst.msk [vmem:[#allocation2] sm:$0x1] %vm130, 0.0
    $region25: #{tpu_custom_call.1} parent=1 // pred_fallthru
      _
    %v132 = vld [vmem:[#allocation2] sm:$0x1]
    %vm133 = vcmask 254976
    %v134 = vsel %vm133, %v125, 0.0
    %v135 = vrot.slane %v134, 4
    %v136 = vadd.f32 %v134, %v135
    %v137 = vrot.slane %v136, 2
    %v138 = vadd.f32 %v136, %v137
    %v139 = vrot.slane %v138, 1
    %v140 = vadd.f32 %v138, %v139
    %v141 = vadd.f32 %v132, %v140
    %vm142 = vcmask 253952
    %143 = vst.msk [vmem:[#allocation2] sm:$0x1] %vm142, %v141
    // Predicated region
    $region26: #{tpu_custom_call.1} parent=1 // pred_check
      %p144 = pneg %p126
    $region27: #{tpu_custom_call.1} parent=1 // pred_check_branch
      %146 = sbr.rel (%p144) target = $region29
    $region28: #{tpu_custom_call.1} parent=1 // pred_region
      %v147 = vld [vmem:[#allocation2] sm:$0x1]
      %v148 = vsel %vm142, %v147, 0.0
      %149 = vadd.xlane.f32.xlu0 %v148
      %v150 = vpop.xlane.xlu0 %149
      %v151 = vrot.slane %v150, 4
      %v152 = vadd.f32 %v150, %v151
      %v153 = vrot.slane %v152, 2
      %v154 = vadd.f32 %v152, %v153
      %v155 = vrot.slane %v154, 1
      %v156 = vadd.f32 %v154, %v155
      %s157 = vtos %v156
      %v158 = vstv %s157
      %159 = vst [vmem:[#allocation6] sm:$0x1] %v158
    $region29: #{tpu_custom_call.1} parent=1 // pred_fallthru
      _
    // Predicated region
    $region30: #{tpu_custom_call.1} parent=1 // pred_check
      _
    $region31: #{tpu_custom_call.1} parent=1 // pred_check_branch
      %161 = sbr.rel (0) target = $region33
    $region32: #{tpu_custom_call.1} parent=1 // pred_region
      %s163 = ssub.s32 16, 16
      %164 = vsyncadd [#allocation5], %s163
      %s166 = sshll.u32 [#allocation6], 4
      %s167 = int_to_ptr.vmem [resolvable:$true] %s166
      %169 = dma.vmem_to_hbm [thread:$0]  %s167, 16, %s4, [#allocation5]
    $region33: #{tpu_custom_call.1} parent=1 // pred_fallthru
      _
    // Predicated region
    $region34: #{tpu_custom_call.1} parent=1 // pred_check
      _
    $region35: #{tpu_custom_call.1} parent=1 // pred_check_branch
      %171 = sbr.rel (0) target = $region37
    $region36: #{tpu_custom_call.1} parent=1 // pred_region
      %172 = dma.done [#allocation5], 16
    $region37: #{tpu_custom_call.1} parent=1 // pred_fallthru
      _
    %173 = vsyncpa [#allocation4], 1
    %174 = vsyncpa [#allocation5], 1

</llo_original>
